<compile_context>
chip_gen: v6e
topology: v6e:2x2x1
jax: 0.10.0
libtpu: 0.0.40
codegen_flags: <defaults>
</compile_context>

<pallas_src>
import functools
import math

import jax
import jax.numpy as jnp
from jax.experimental import pallas as pl
from jax.experimental.pallas import tpu as pltpu


def _cnn_kernel(x_ref, w_ref, b_ref, o_ref, *, f: int, l_out: int, compute_dtype):
    # x_ref: (TN, Q)        flat word data (lane-dense)
    # w_ref: (Q, l_out*f)   packed Toeplitz conv weight (resident)
    # b_ref: (1, f)         bias (f32)
    # o_ref: (TN, f)        per-word output
    x = x_ref[...]
    if compute_dtype is not None and x.dtype != compute_dtype:
        x = x.astype(compute_dtype)                  # in-kernel cast (no HBM cost)
    y = jnp.dot(x, w_ref[...],
                preferred_element_type=jnp.float32)  # (TN, l_out*f)
    # max over output-time slabs (static lane slices of width f)
    m = y[:, 0:f]
    for t in range(1, l_out):
        m = jnp.maximum(m, y[:, t * f:(t + 1) * f])
    # max_t relu(y_t + b) == relu(max_t(y_t) + b)
    m = m + b_ref[...]
    o_ref[...] = jnp.maximum(m, 0.0).astype(o_ref.dtype)


def _pack_conv_weight(W, *, m_word: int, k: int, padding: int, l_out: int):
    """Pack Conv1d weight (f, e_char, k) into a (Q, l_out*f) GEMM matrix.

    The PyTorch `.view(N, e_char, m_word)` means conv channel c / time u read
    flat word element q = c*m_word + u.  With zero time-padding p:
        y[t, of] = sum_q flat[q] * W[of, q//m_word, (q%m_word) - t + p]
    (coefficient is 0 when the tap index falls outside [0, k)).
    """
    f, e_char, _ = W.shape
    Q = e_char * m_word
    q = jnp.arange(Q)
    c = q // m_word                                   # conv input channel
    u = q % m_word                                    # time within the word
    t = jnp.arange(l_out)
    j = u[:, None] - t[None, :] + padding             # (Q, l_out) tap index
    valid = (j >= 0) & (j < k)
    jc = jnp.clip(j, 0, k - 1)
    Wg = W[:, c[:, None], jc]                         # (f, Q, l_out)
    Wg = jnp.where(valid[None, :, :], Wg, 0.0)
    return jnp.transpose(Wg, (1, 2, 0)).reshape(Q, l_out * f)  # col = t*f + of


def cnn_forward(x_reshaped, W, b, *, k: int, padding: int,
                block_words: int = 4096, compute_dtype=None):
    """x_reshaped: (B, S, m_word, e_char); W: (f, e_char, k); b: (f,)."""
    B, S, m_word, e_char = x_reshaped.shape
    f = W.shape[0]
    N = B * S
    Q = m_word * e_char
    l_out = m_word + 2 * padding - k + 1
    assert l_out >= 1, "m_word too small for this kernel/padding"

    # Zero-cost glue: flatten each word's raw data (matches torch .view).
    x_flat = x_reshaped.reshape(N, Q)

    # Tiny weight packing (params only, ~k*e_char*f values).
    w_big = _pack_conv_weight(W, m_word=m_word, k=k, padding=padding, l_out=l_out)
    b2 = b.reshape(1, f).astype(jnp.float32)

    # Weight matches the dtype the MXU will see; the activation stream is NOT
    # cast in the wrapper (any requested cast happens inside the kernel).
    mxu_dtype = compute_dtype if compute_dtype is not None else x_flat.dtype
    w_big = w_big.astype(mxu_dtype)

    # Word-axis tiling: big fixed block for large N, exact single block for
    # small N.  No wrapper padding; the last block may be partial (Pallas
    # masks the partial output write).
    if N <= block_words:
        TN = N                                        # full dim -> exact block
    else:
        TN = block_words                              # fixed multiple of 256
    nblocks = pl.cdiv(N, TN)

    out_dtype = x_reshaped.dtype
    cost = pl.CostEstimate(
        flops=2 * N * Q * l_out * f,
        transcendentals=0,
        bytes_accessed=(N * Q * x_flat.dtype.itemsize
                        + Q * l_out * f * w_big.dtype.itemsize
                        + N * f * jnp.dtype(out_dtype).itemsize),
    )

    out = pl.pallas_call(
        functools.partial(_cnn_kernel, f=f, l_out=l_out,
                          compute_dtype=compute_dtype),
        out_shape=jax.ShapeDtypeStruct((N, f), out_dtype),
        grid=(nblocks,),
        in_specs=[
            pl.BlockSpec((TN, Q), lambda i: (i, 0)),            # activations
            pl.BlockSpec((Q, l_out * f), lambda i: (0, 0)),     # resident weight
            pl.BlockSpec((1, f), lambda i: (0, 0)),             # resident bias
        ],
        out_specs=pl.BlockSpec((TN, f), lambda i: (i, 0)),
        compiler_params=pltpu.CompilerParams(
            dimension_semantics=("parallel",),
            vmem_limit_bytes=32 * 1024 * 1024),
        cost_estimate=cost,
    )(x_flat, w_big, b2)

    return out.reshape(B, S, f)


def cnn_forward_ref(x_reshaped, W, b, *, k: int, padding: int):
    """Pure-JAX reference (mirrors the PyTorch forward incl. the .view quirk)."""
    B, S, m_word, e_char = x_reshaped.shape
    x = x_reshaped.astype(jnp.float32).reshape(B * S, e_char, m_word)
    y = jax.lax.conv_general_dilated(
        x, W, window_strides=(1,), padding=[(padding, padding)],
        dimension_numbers=("NCH", "OIH", "NCH"))
    y = y + b[None, :, None]
    y = jnp.maximum(y, 0.0)
    y = jnp.max(y, axis=2)
    return y.reshape(B, S, -1)


if __name__ == "__main__":
    # Small shapes consistent with the module's forward.
    B, S, m_word = 2, 3, 8
    e_char, f, k, padding = 50, 32, 5, 1

    key = jax.random.PRNGKey(0)
    kx, kw, kb = jax.random.split(key, 3)

    x_reshaped = jax.random.normal(kx, (B, S, m_word, e_char), jnp.float32)

    # Deterministic Conv1d-style init (uniform in +-1/sqrt(fan_in)).
    bound = 1.0 / math.sqrt(e_char * k)
    W = jax.random.uniform(kw, (f, e_char, k), jnp.float32, -bound, bound)
    b = jax.random.uniform(kb, (f,), jnp.float32, -bound, bound)

    ref = cnn_forward_ref(x_reshaped, W, b, k=k, padding=padding)

    # f32 path (default): tight check against the reference.
    run = jax.jit(functools.partial(cnn_forward, k=k, padding=padding))
    out = jax.block_until_ready(run(x_reshaped, W, b))
    assert out.shape == (B, S, f), out.shape
    assert jnp.allclose(out, ref, rtol=5e-5, atol=5e-5), \
        float(jnp.max(jnp.abs(out - ref)))

    # bf16 path: only used when the producer already emits bf16 (no wrapper
    # cast of the activation stream); looser tolerance.
    x_bf16 = x_reshaped.astype(jnp.bfloat16)
    run_bf16 = jax.jit(functools.partial(
        cnn_forward, k=k, padding=padding, compute_dtype=jnp.bfloat16))
    out_bf16 = jax.block_until_ready(run_bf16(x_bf16, W, b))
    assert out_bf16.shape == (B, S, f), out_bf16.shape
    assert jnp.allclose(out_bf16.astype(jnp.float32), ref, rtol=5e-2, atol=5e-2), \
        float(jnp.max(jnp.abs(out_bf16.astype(jnp.float32) - ref)))

    print("KERNEL_OK")
</pallas_src>

<mosaic_0001>
module attributes {stable_mosaic.version = 11 : i64} {
  func.func @_cnn_kernel(%arg0: i32, %arg1: memref<6x400xf32, #tpu.memory_space<vmem>>, %arg2: memref<400x192xf32, #tpu.memory_space<vmem>>, %arg3: memref<1x32xf32, #tpu.memory_space<vmem>>, %arg4: memref<6x32xf32, #tpu.memory_space<vmem>>) attributes {dimension_semantics = [#tpu.dimension_semantics<parallel>], iteration_bounds = array<i64: 1>, scalar_prefetch = 0 : i64, scratch_operands = 0 : i64, tpu.core_type = #tpu.core_type<tc>, window_params = [{transform_indices = @transform_0, window_bounds = array<i64: 6, 400>}, {pipeline_mode = #tpu.pipeline_mode<synchronous>, transform_indices = @transform_1, window_bounds = array<i64: 400, 192>}, {pipeline_mode = #tpu.pipeline_mode<synchronous>, transform_indices = @transform_2, window_bounds = array<i64: 1, 32>}, {transform_indices = @transform_3, window_bounds = array<i64: 6, 32>}]} {
    %c0 = arith.constant 0 : index
    %c0_0 = arith.constant 0 : index
    %0 = vector.load %arg1[%c0, %c0_0] : memref<6x400xf32, #tpu.memory_space<vmem>>, vector<6x400xf32>
    %c0_1 = arith.constant 0 : index
    %c0_2 = arith.constant 0 : index
    %1 = vector.load %arg2[%c0_1, %c0_2] : memref<400x192xf32, #tpu.memory_space<vmem>>, vector<400x192xf32>
    %cst = arith.constant dense<0.000000e+00> : vector<6x192xf32>
    %2 = tpu.matmul %0, %1, %cst {dimension_numbers = #tpu.dot_dimension_numbers<[1], [0], [0], [1], [0, 0, 1, 1], [], []>} : vector<6x400xf32>, vector<400x192xf32>, vector<6x192xf32> -> vector<6x192xf32>
    %3 = vector.extract_strided_slice %2 {offsets = [0, 0], sizes = [6, 32], strides = [1, 1]} : vector<6x192xf32> to vector<6x32xf32>
    %4 = vector.extract_strided_slice %2 {offsets = [0, 32], sizes = [6, 32], strides = [1, 1]} : vector<6x192xf32> to vector<6x32xf32>
    %5 = arith.maximumf %3, %4 : vector<6x32xf32>
    %6 = vector.extract_strided_slice %2 {offsets = [0, 64], sizes = [6, 32], strides = [1, 1]} : vector<6x192xf32> to vector<6x32xf32>
    %7 = arith.maximumf %5, %6 : vector<6x32xf32>
    %8 = vector.extract_strided_slice %2 {offsets = [0, 96], sizes = [6, 32], strides = [1, 1]} : vector<6x192xf32> to vector<6x32xf32>
    %9 = arith.maximumf %7, %8 : vector<6x32xf32>
    %10 = vector.extract_strided_slice %2 {offsets = [0, 128], sizes = [6, 32], strides = [1, 1]} : vector<6x192xf32> to vector<6x32xf32>
    %11 = arith.maximumf %9, %10 : vector<6x32xf32>
    %12 = vector.extract_strided_slice %2 {offsets = [0, 160], sizes = [6, 32], strides = [1, 1]} : vector<6x192xf32> to vector<6x32xf32>
    %13 = arith.maximumf %11, %12 : vector<6x32xf32>
    %c0_3 = arith.constant 0 : index
    %c0_4 = arith.constant 0 : index
    %14 = vector.load %arg3[%c0_3, %c0_4] : memref<1x32xf32, #tpu.memory_space<vmem>>, vector<1x32xf32>
    %15 = vector.broadcast %14 : vector<1x32xf32> to vector<6x32xf32>
    %16 = arith.addf %13, %15 : vector<6x32xf32>
    %cst_5 = arith.constant 0.000000e+00 : f32
    %17 = vector.broadcast %cst_5 : f32 to vector<6x32xf32>
    %18 = arith.maximumf %16, %17 : vector<6x32xf32>
    %c0_6 = arith.constant 0 : index
    %c0_7 = arith.constant 0 : index
    %19 = vector.load %arg4[%c0_6, %c0_7] : memref<6x32xf32, #tpu.memory_space<vmem>>, vector<6x32xf32>
    tpu.vector_store %arg4[%c0_6, %c0_7], %18 {strides = array<i32>} : memref<6x32xf32, #tpu.memory_space<vmem>>, vector<6x32xf32>,
    return
  }
  func.func @transform_0(%arg0: i32) -> (i32, i32) {
    %c0_i32 = arith.constant 0 : i32
    %c0_i32_0 = arith.constant 0 : i32
    return %arg0, %c0_i32 : i32, i32
  }
  func.func @transform_1(%arg0: i32) -> (i32, i32) {
    %c0_i32 = arith.constant 0 : i32
    %c0_i32_0 = arith.constant 0 : i32
    %c0_i32_1 = arith.constant 0 : i32
    return %c0_i32, %c0_i32_0 : i32, i32
  }
  func.func @transform_2(%arg0: i32) -> (i32, i32) {
    %c0_i32 = arith.constant 0 : i32
    %c0_i32_0 = arith.constant 0 : i32
    %c0_i32_1 = arith.constant 0 : i32
    return %c0_i32, %c0_i32_0 : i32, i32
  }
  func.func @transform_3(%arg0: i32) -> (i32, i32) {
    %c0_i32 = arith.constant 0 : i32
    %c0_i32_0 = arith.constant 0 : i32
    return %arg0, %c0_i32 : i32, i32
  }
}

</mosaic_0001>

<llo_original>
// kernel: cnn_forward.1
$region0: #{cnn_forward.1}
  #allocation0 [shape = 'u32[]', space=smem, size = 0x4, offset = 0x4, fixed_abs, tag = 'smem constant byte address 0x4 - core index']
  #allocation1 [shape = 'u32[144,128]{1,0:T(1,128)}', space=vmem, size = 0x12000, scoped, tag = 'internal scratch']
  %s0 = inlined_call_operand.vmem [shape: f32[6,400], index: 0, kind: input, shape index: {}]
  %s1 = inlined_call_operand.vmem [shape: f32[400,192], index: 1, kind: input, shape index: {}]
  %s2 = inlined_call_operand.vmem [shape: f32[1,32], index: 2, kind: input, shape index: {}]
  %s3 = inlined_call_operand.vmem [shape: f32[6,32], index: 3, kind: output, shape index: {}]
  %s4 = sld [smem:[#allocation0]]
  $region22: #{cnn_forward.1} parent=0
    _
  %s6 = ssub.s32 1, %s4
  %s7 = scalar_select 0, %s6, %s4
  // Predicated region
  $region2: #{cnn_forward.1} parent=0 // pred_check
    _
  $region3: #{cnn_forward.1} parent=0 // pred_check_branch
    %9 = sbr.rel (0) target = $region5
  $region4: #{cnn_forward.1} parent=0 // pred_region
    _
  $region5: #{cnn_forward.1} parent=0 // pred_fallthru
    _
  // Predicated region
  $region6: #{cnn_forward.1} parent=0 // pred_check
    _
  $region7: #{cnn_forward.1} parent=0 // pred_check_branch
    %11 = sbr.rel (0) target = $region9
  $region8: #{cnn_forward.1} parent=0 // pred_region
    _
  $region9: #{cnn_forward.1} parent=0 // pred_fallthru
    _
  // Predicated region
  $region10: #{cnn_forward.1} parent=0 // pred_check
    _
  $region11: #{cnn_forward.1} parent=0 // pred_check_branch
    %13 = sbr.rel (0) target = $region13
  $region12: #{cnn_forward.1} parent=0 // pred_region
    _
  $region13: #{cnn_forward.1} parent=0 // pred_fallthru
    _
  %v14 = vld [vmem:[%s0] sm:$0x3f]
  %v15 = vld [vmem:[%s0 + $0x8] sm:$0x3f]
  %v16 = vld [vmem:[%s0 + $0x10] sm:$0x3f]
  %v17 = vld [vmem:[%s0 + $0x18] sm:$0x3f]
  %v18 = vld [vmem:[%s1] sm:$0xff]
  %v19 = vld [vmem:[%s1 + $0x8] sm:$0xff]
  %v20 = vld [vmem:[%s1 + $0x10] sm:$0xff]
  %v21 = vld [vmem:[%s1 + $0x18] sm:$0xff]
  %v22 = vld [vmem:[%s1 + $0x20] sm:$0xff]
  %v23 = vld [vmem:[%s1 + $0x28] sm:$0xff]
  %v24 = vld [vmem:[%s1 + $0x30] sm:$0xff]
  %v25 = vld [vmem:[%s1 + $0x38] sm:$0xff]
  %v26 = vld [vmem:[%s1 + $0x40] sm:$0xff]
  %v27 = vld [vmem:[%s1 + $0x48] sm:$0xff]
  %v28 = vld [vmem:[%s1 + $0x50] sm:$0xff]
  %v29 = vld [vmem:[%s1 + $0x58] sm:$0xff]
  %v30 = vld [vmem:[%s1 + $0x60] sm:$0xff]
  %v31 = vld [vmem:[%s1 + $0x68] sm:$0xff]
  %v32 = vld [vmem:[%s1 + $0x70] sm:$0xff]
  %v33 = vld [vmem:[%s1 + $0x78] sm:$0xff]
  %v34 = vld [vmem:[%s1 + $0x80] sm:$0xff]
  %v35 = vld [vmem:[%s1 + $0x88] sm:$0xff]
  %v36 = vld [vmem:[%s1 + $0x90] sm:$0xff]
  %v37 = vld [vmem:[%s1 + $0x98] sm:$0xff]
  %v38 = vld [vmem:[%s1 + $0xa0] sm:$0xff]
  %v39 = vld [vmem:[%s1 + $0xa8] sm:$0xff]
  %v40 = vld [vmem:[%s1 + $0xb0] sm:$0xff]
  %v41 = vld [vmem:[%s1 + $0xb8] sm:$0xff]
  %v42 = vld [vmem:[%s1 + $0xc0] sm:$0xff]
  %v43 = vld [vmem:[%s1 + $0xc8] sm:$0xff]
  %v44 = vld [vmem:[%s1 + $0xd0] sm:$0xff]
  %v45 = vld [vmem:[%s1 + $0xd8] sm:$0xff]
  %v46 = vld [vmem:[%s1 + $0xe0] sm:$0xff]
  %v47 = vld [vmem:[%s1 + $0xe8] sm:$0xff]
  %v48 = vld [vmem:[%s1 + $0xf0] sm:$0xff]
  %v49 = vld [vmem:[%s1 + $0xf8] sm:$0xff]
  %v50 = vld [vmem:[%s1 + $0x100] sm:$0xff]
  %v51 = vld [vmem:[%s1 + $0x108] sm:$0xff]
  %v52 = vld [vmem:[%s1 + $0x110] sm:$0xff]
  %v53 = vld [vmem:[%s1 + $0x118] sm:$0xff]
  %v54 = vld [vmem:[%s1 + $0x120] sm:$0xff]
  %v55 = vld [vmem:[%s1 + $0x128] sm:$0xff]
  %v56 = vld [vmem:[%s1 + $0x130] sm:$0xff]
  %v57 = vld [vmem:[%s1 + $0x138] sm:$0xff]
  %v58 = vld [vmem:[%s1 + $0x140] sm:$0xff]
  %v59 = vld [vmem:[%s1 + $0x148] sm:$0xff]
  %v60 = vld [vmem:[%s1 + $0x150] sm:$0xff]
  %v61 = vld [vmem:[%s1 + $0x158] sm:$0xff]
  %v62 = vld [vmem:[%s1 + $0x160] sm:$0xff]
  %v63 = vld [vmem:[%s1 + $0x168] sm:$0xff]
  %v64 = vld [vmem:[%s1 + $0x170] sm:$0xff]
  %v65 = vld [vmem:[%s1 + $0x178] sm:$0xff]
  %v66 = vld [vmem:[%s1 + $0x180] sm:$0xff]
  %v67 = vld [vmem:[%s1 + $0x188] sm:$0xff]
  %v68 = vld [vmem:[%s1 + $0x190] sm:$0xff]
  %v69 = vld [vmem:[%s1 + $0x198] sm:$0xff]
  %v70 = vld [vmem:[%s1 + $0x1a0] sm:$0xff]
  %v71 = vld [vmem:[%s1 + $0x1a8] sm:$0xff]
  %v72 = vld [vmem:[%s1 + $0x1b0] sm:$0xff]
  %v73 = vld [vmem:[%s1 + $0x1b8] sm:$0xff]
  %v74 = vld [vmem:[%s1 + $0x1c0] sm:$0xff]
  %v75 = vld [vmem:[%s1 + $0x1c8] sm:$0xff]
  %v76 = vld [vmem:[%s1 + $0x1d0] sm:$0xff]
  %v77 = vld [vmem:[%s1 + $0x1d8] sm:$0xff]
  %v78 = vld [vmem:[%s1 + $0x1e0] sm:$0xff]
  %v79 = vld [vmem:[%s1 + $0x1e8] sm:$0xff]
  %v80 = vld [vmem:[%s1 + $0x1f0] sm:$0xff]
  %v81 = vld [vmem:[%s1 + $0x1f8] sm:$0xff]
  %v82 = vld [vmem:[%s1 + $0x200] sm:$0xff]
  %v83 = vld [vmem:[%s1 + $0x208] sm:$0xff]
  %v84 = vld [vmem:[%s1 + $0x210] sm:$0xff]
  %v85 = vld [vmem:[%s1 + $0x218] sm:$0xff]
  %v86 = vld [vmem:[%s1 + $0x220] sm:$0xff]
  %v87 = vld [vmem:[%s1 + $0x228] sm:$0xff]
  %v88 = vld [vmem:[%s1 + $0x230] sm:$0xff]
  %v89 = vld [vmem:[%s1 + $0x238] sm:$0xff]
  %v90 = vld [vmem:[%s1 + $0x240] sm:$0xff]
  %v91 = vld [vmem:[%s1 + $0x248] sm:$0xff]
  %v92 = vld [vmem:[%s1 + $0x250] sm:$0xff]
  %v93 = vld [vmem:[%s1 + $0x258] sm:$0xff]
  %v94 = vld [vmem:[%s1 + $0x260] sm:$0xff]
  %v95 = vld [vmem:[%s1 + $0x268] sm:$0xff]
  %v96 = vld [vmem:[%s1 + $0x270] sm:$0xff]
  %v97 = vld [vmem:[%s1 + $0x278] sm:$0xff]
  %v98 = vld [vmem:[%s1 + $0x280] sm:$0xff]
  %v99 = vld [vmem:[%s1 + $0x288] sm:$0xff]
  %v100 = vld [vmem:[%s1 + $0x290] sm:$0xff]
  %v101 = vld [vmem:[%s1 + $0x298] sm:$0xff]
  %v102 = vld [vmem:[%s1 + $0x2a0] sm:$0xff]
  %v103 = vld [vmem:[%s1 + $0x2a8] sm:$0xff]
  %v104 = vld [vmem:[%s1 + $0x2b0] sm:$0xff]
  %v105 = vld [vmem:[%s1 + $0x2b8] sm:$0xff]
  %v106 = vld [vmem:[%s1 + $0x2c0] sm:$0xff]
  %v107 = vld [vmem:[%s1 + $0x2c8] sm:$0xff]
  %v108 = vld [vmem:[%s1 + $0x2d0] sm:$0xff]
  %v109 = vld [vmem:[%s1 + $0x2d8] sm:$0xff]
  %v110 = vld [vmem:[%s1 + $0x2e0] sm:$0xff]
  %v111 = vld [vmem:[%s1 + $0x2e8] sm:$0xff]
  %v112 = vld [vmem:[%s1 + $0x2f0] sm:$0xff]
  %v113 = vld [vmem:[%s1 + $0x2f8] sm:$0xff]
  %v114 = vld [vmem:[%s1 + $0x300] sm:$0xff]
  %v115 = vld [vmem:[%s1 + $0x308] sm:$0xff]
  %v116 = vld [vmem:[%s1 + $0x310] sm:$0xff]
  %v117 = vld [vmem:[%s1 + $0x318] sm:$0xff]
  %vm118 = vcmask 130048
  %v120 = vsel %vm118, %v17, 0
  %122 = vmatprep.subr.mxu0 %v49
  %123 = vmatpush1.msra.mxu0 %v48
  %124 = vmatprep.subr.mxu0 %v47
  %125 = vmatpush1.msra.mxu0 %v46
  %126 = vmatprep.subr.mxu0 %v45
  %127 = vmatpush1.msra.mxu0 %v44
  %128 = vmatprep.subr.mxu0 %v43
  %129 = vmatpush1.msra.mxu0 %v42
  %130 = vmatprep.subr.mxu0 %v41
  %131 = vmatpush1.msra.mxu0 %v40
  %132 = vmatprep.subr.mxu0 %v39
  %133 = vmatpush1.msra.mxu0 %v38
  %134 = vmatprep.subr.mxu0 %v37
  %135 = vmatpush1.msra.mxu0 %v36
  %136 = vmatprep.subr.mxu0 %v35
  %137 = vmatpush1.msra.mxu0 %v34
  %138 = vmatprep.subr.mxu0 %v33
  %139 = vmatpush1.msra.mxu0 %v32
  %140 = vmatprep.subr.mxu0 %v31
  %141 = vmatpush1.msra.mxu0 %v30
  %142 = vmatprep.subr.mxu0 %v29
  %143 = vmatpush1.msra.mxu0 %v28
  %144 = vmatprep.subr.mxu0 %v27
  %145 = vmatpush1.msra.mxu0 %v26
  %146 = vmatprep.subr.mxu0 %v25
  %147 = vmatpush1.msra.mxu0 %v24
  %148 = vmatprep.subr.mxu0 %v23
  %149 = vmatpush1.msra.mxu0 %v22
  %150 = vmatprep.subr.mxu0 %v21
  %151 = vmatpush1.msra.mxu0 %v20
  %152 = vmatprep.subr.mxu0 %v19
  %153 = vmatpush1.msra.mxu0 %v18
  %154 = vmatprep.subr.mxu0 %v81
  %155 = vmatpush2.msra.mxu0 %v80
  %156 = vmatprep.subr.mxu0 %v79
  %157 = vmatpush2.msra.mxu0 %v78
  %158 = vmatprep.subr.mxu0 %v77
  %159 = vmatpush2.msra.mxu0 %v76
  %160 = vmatprep.subr.mxu0 %v75
  %161 = vmatpush2.msra.mxu0 %v74
  %162 = vmatprep.subr.mxu0 %v73
  %163 = vmatpush2.msra.mxu0 %v72
  %164 = vmatprep.subr.mxu0 %v71
  %165 = vmatpush2.msra.mxu0 %v70
  %166 = vmatprep.subr.mxu0 %v69
  %167 = vmatpush2.msra.mxu0 %v68
  %168 = vmatprep.subr.mxu0 %v67
  %169 = vmatpush2.msra.mxu0 %v66
  %170 = vmatprep.subr.mxu0 %v65
  %171 = vmatpush2.msra.mxu0 %v64
  %172 = vmatprep.subr.mxu0 %v63
  %173 = vmatpush2.msra.mxu0 %v62
  %174 = vmatprep.subr.mxu0 %v61
  %175 = vmatpush2.msra.mxu0 %v60
  %176 = vmatprep.subr.mxu0 %v59
  %177 = vmatpush2.msra.mxu0 %v58
  %178 = vmatprep.subr.mxu0 %v57
  %179 = vmatpush2.msra.mxu0 %v56
  %180 = vmatprep.subr.mxu0 %v55
  %181 = vmatpush2.msra.mxu0 %v54
  %182 = vmatprep.subr.mxu0 %v53
  %183 = vmatpush2.msra.mxu0 %v52
  %184 = vmatprep.subr.mxu0 %v51
  %185 = vmatpush2.msra.mxu0 %v50
  %186 = vmatprep.mubr.f32.mxu0 %v15
  %187 = vmatmul.mubr.f32.gmra.mxu0 %v14
  %v188 = vpop.f32.mrf.mxu0
  %v189 = vadd.f32 0.0, %v188
  %v190 = vpop.f32.mrf.mxu0
  %v191 = vadd.f32 0.0, %v190
  %192 = vdwg.mxu0
  %193 = vmatprep.subr.mxu0 %v113
  %194 = vmatpush1.msra.mxu0 %v112
  %195 = vmatprep.subr.mxu0 %v111
  %196 = vmatpush1.msra.mxu0 %v110
  %197 = vmatprep.subr.mxu0 %v109
  %198 = vmatpush1.msra.mxu0 %v108
  %199 = vmatprep.subr.mxu0 %v107
  %200 = vmatpush1.msra.mxu0 %v106
  %201 = vmatprep.subr.mxu0 %v105
  %202 = vmatpush1.msra.mxu0 %v104
  %203 = vmatprep.subr.mxu0 %v103
  %204 = vmatpush1.msra.mxu0 %v102
  %205 = vmatprep.subr.mxu0 %v101
  %206 = vmatpush1.msra.mxu0 %v100
  %207 = vmatprep.subr.mxu0 %v99
  %208 = vmatpush1.msra.mxu0 %v98
  %209 = vmatprep.subr.mxu0 %v97
  %210 = vmatpush1.msra.mxu0 %v96
  %211 = vmatprep.subr.mxu0 %v95
  %212 = vmatpush1.msra.mxu0 %v94
  %213 = vmatprep.subr.mxu0 %v93
  %214 = vmatpush1.msra.mxu0 %v92
  %215 = vmatprep.subr.mxu0 %v91
  %216 = vmatpush1.msra.mxu0 %v90
  %217 = vmatprep.subr.mxu0 %v89
  %218 = vmatpush1.msra.mxu0 %v88
  %219 = vmatprep.subr.mxu0 %v87
  %220 = vmatpush1.msra.mxu0 %v86
  %221 = vmatprep.subr.mxu0 %v85
  %222 = vmatpush1.msra.mxu0 %v84
  %223 = vmatprep.subr.mxu0 %v83
  %224 = vmatpush1.msra.mxu0 %v82
  %225 = vmatprep.subr.mxu0 0.0
  %226 = vmatpush2.msra.mxu0 0.0
  %227 = vmatprep.subr.mxu0 0.0
  %228 = vmatpush2.msra.mxu0 0.0
  %229 = vmatprep.subr.mxu0 0.0
  %230 = vmatpush2.msra.mxu0 0.0
  %231 = vmatprep.subr.mxu0 0.0
  %232 = vmatpush2.msra.mxu0 0.0
  %233 = vmatprep.subr.mxu0 0.0
  %234 = vmatpush2.msra.mxu0 0.0
  %235 = vmatprep.subr.mxu0 0.0
  %236 = vmatpush2.msra.mxu0 0.0
  %237 = vmatprep.subr.mxu0 0.0
  %238 = vmatpush2.msra.mxu0 0.0
  %239 = vmatprep.subr.mxu0 0.0
  %240 = vmatpush2.msra.mxu0 0.0
  %241 = vmatprep.subr.mxu0 0.0
  %242 = vmatpush2.msra.mxu0 0.0
  %243 = vmatprep.subr.mxu0 0.0
  %244 = vmatpush2.msra.mxu0 0.0
  %245 = vmatprep.subr.mxu0 0.0
  %246 = vmatpush2.msra.mxu0 0.0
  %247 = vmatprep.subr.mxu0 0.0
  %248 = vmatpush2.msra.mxu0 0.0
  %249 = vmatprep.subr.mxu0 0.0
  %250 = vmatpush2.msra.mxu0 0.0
  %251 = vmatprep.subr.mxu0 0.0
  %252 = vmatpush2.msra.mxu0 0.0
  %253 = vmatprep.subr.mxu0 %v117
  %254 = vmatpush2.msra.mxu0 %v116
  %255 = vmatprep.subr.mxu0 %v115
  %256 = vmatpush2.msra.mxu0 %v114
  %257 = vmatprep.mubr.f32.mxu0 %v120
  %258 = vmatmul.mubr.f32.gmra.mxu0 %v16
  %v259 = vpop.f32.mrf.mxu0
  %v260 = vadd.f32 %v189, %v259
  %v261 = vpop.f32.mrf.mxu0
  %v262 = vadd.f32 %v191, %v261
  %263 = vdwg.mxu0
  %265 = vrot.lane.b32.xlu0 %v260, 96
  %v266 = vpop.permute.xlu0 %265
  %v268 = vmax.f32 %v260, %v266
  %269 = vrot.lane.b32.xlu0 %v260, 64
  %v270 = vpop.permute.xlu0 %269
  %v272 = vmax.f32 %v268, %v270
  %273 = vrot.lane.b32.xlu0 %v260, 32
  %v274 = vpop.permute.xlu0 %273
  %v276 = vmax.f32 %v272, %v274
  %v277 = vmax.f32 %v276, %v262
  %279 = vrot.lane.b32.xlu0 %v262, 96
  %v280 = vpop.permute.xlu0 %279
  %v282 = vmax.f32 %v277, %v280
  %v283 = vld [vmem:[%s2] sm:$0x1]
  %v285 = vlaneseq
  %v286 = vshrl.u32 %v285, 7
  %v287 = vsub.s32 0, %v286
  %v288 = vrot.slane %v283, %v287
  %v290 = vadd.f32 %v282, %v288
  %v291 = vmax.f32 %v290, 0.0
  %vm292 = vcmask 259072
  %293 = vst.msk [vmem:[%s3] sm:$0x3f] %vm292, %v291
  // Predicated region
  $region14: #{cnn_forward.1} parent=0 // pred_check
    _
  $region15: #{cnn_forward.1} parent=0 // pred_check_branch
    %295 = sbr.rel (0) target = $region17
  $region16: #{cnn_forward.1} parent=0 // pred_region
    _
  $region17: #{cnn_forward.1} parent=0 // pred_fallthru
    _
  // Predicated region
  $region18: #{cnn_forward.1} parent=0 // pred_check
    _
  $region19: #{cnn_forward.1} parent=0 // pred_check_branch
    %297 = sbr.rel (0) target = $region21
  $region20: #{cnn_forward.1} parent=0 // pred_region
    _
  $region21: #{cnn_forward.1} parent=0 // pred_fallthru
    _

</llo_original>
